<compile_context>
chip_gen: v5e
topology: v5e:2x2
jax: 0.10.0
libtpu: 0.0.40
codegen_flags: <defaults>
</compile_context>

<pallas_src>
import jax
import jax.numpy as jnp
from jax.experimental import pallas as pl
from jax.experimental.pallas import tpu as pltpu

# ---- packed-parameter layout (rows aligned to 8-sublane boundaries) ----------
_ROW_W1, _ROW_W2, _ROW_W3 = 0, 24, 40   # w1:(20,10)+b1, w2:(10,20)+b2, w3:(1,10)+b3
_P_ROWS, _P_COLS = 48, 21
_H1, _H2, _F_IN, _F_OUT = 20, 10, 10, 1

_MAX_TILE_B = 8192                      # batch columns per grid step (cap)


def _round_up(v, m):
    return ((v + m - 1) // m) * m


def _choose_tile_b(B):
    # >= 2 tiles when B allows it (v7x dual-TC sharding of the "parallel" axis),
    # multiple of 128 for lane-dense blocks, capped so VMEM stays small.
    half = pl.cdiv(B, 2)
    return max(128, min(_MAX_TILE_B, _round_up(half, 128)))


def mlp_kernel(x_ref, p_ref, o_ref):
    x = x_ref[...]                                   # (10, TILE_B), batch on lanes
    p = p_ref[...]                                   # (48, 21) resident params

    w1 = p[_ROW_W1:_ROW_W1 + _H1, 0:_F_IN]           # (20, 10)
    b1 = p[_ROW_W1:_ROW_W1 + _H1, _F_IN:_F_IN + 1]   # (20, 1)
    w2 = p[_ROW_W2:_ROW_W2 + _H2, 0:_H1]             # (10, 20)
    b2 = p[_ROW_W2:_ROW_W2 + _H2, _H1:_H1 + 1]       # (10, 1)
    w3 = p[_ROW_W3:_ROW_W3 + _F_OUT, 0:_H2]          # (1, 10)
    b3 = p[_ROW_W3:_ROW_W3 + _F_OUT, _H2:_H2 + 1]    # (1, 1)

    h1 = jnp.dot(w1, x, preferred_element_type=jnp.float32) + b1     # (20, TILE_B)
    h1 = jnp.maximum(h1, 0.0)
    h2 = jnp.dot(w2, h1, preferred_element_type=jnp.float32) + b2    # (10, TILE_B)
    h2 = jnp.maximum(h2, 0.0)
    y = jnp.dot(w3, h2, preferred_element_type=jnp.float32) + b3     # (1, TILE_B)
    o_ref[...] = y.astype(o_ref.dtype)               # lane-dense (1, TILE_B) store


@jax.jit
def sequential_model_forward(x, packed_params):
    """x: (B, 10) float32 -> (B, 1) float32 (same semantics as the PyTorch module)."""
    B, f_in = x.shape
    assert f_in == _F_IN

    tile_b = _choose_tile_b(B)           # static under jit (shape-derived)
    n_tiles = pl.cdiv(B, tile_b)

    # One transpose so the kernel sees a lane-dense (10, B) input; no batch padding.
    xt = x.T                             # (10, B)

    out_t = pl.pallas_call(
        mlp_kernel,
        out_shape=jax.ShapeDtypeStruct((_F_OUT, B), jnp.float32),
        grid_spec=pltpu.PrefetchScalarGridSpec(
            num_scalar_prefetch=0,
            grid=(n_tiles,),
            in_specs=[
                # x: streamed batch tiles, double-buffered by Pallas; last tile ragged.
                pl.BlockSpec((_F_IN, tile_b), lambda i: (0, i)),
                # packed params: same block every step -> resident in VMEM.
                pl.BlockSpec((_P_ROWS, _P_COLS), lambda i: (0, 0)),
            ],
            out_specs=pl.BlockSpec((_F_OUT, tile_b), lambda i: (0, i)),
        ),
        compiler_params=pltpu.CompilerParams(
            dimension_semantics=("parallel",),
        ),
    )(xt, packed_params)

    return out_t.T                        # (B, 1)


def pack_params(params):
    """Pack (w1,b1,w2,b2,w3,b3) into one (48, 21) f32 array (row-aligned slots)."""
    w1, b1, w2, b2, w3, b3 = params
    p = jnp.zeros((_P_ROWS, _P_COLS), jnp.float32)
    p = p.at[_ROW_W1:_ROW_W1 + _H1, 0:_F_IN].set(w1)
    p = p.at[_ROW_W1:_ROW_W1 + _H1, _F_IN].set(b1)
    p = p.at[_ROW_W2:_ROW_W2 + _H2, 0:_H1].set(w2)
    p = p.at[_ROW_W2:_ROW_W2 + _H2, _H1].set(b2)
    p = p.at[_ROW_W3:_ROW_W3 + _F_OUT, 0:_H2].set(w3)
    p = p.at[_ROW_W3:_ROW_W3 + _F_OUT, _H2].set(b3)
    return p


def init_params(key):
    """Deterministic init mimicking nn.Linear default (uniform(+-1/sqrt(fan_in)))."""
    dims = [(10, 20), (20, 10), (10, 1)]
    params = []
    for (fan_in, fan_out) in dims:
        key, kw, kb = jax.random.split(key, 3)
        bound = 1.0 / jnp.sqrt(fan_in)
        w = jax.random.uniform(kw, (fan_out, fan_in), jnp.float32, -bound, bound)
        b = jax.random.uniform(kb, (fan_out,), jnp.float32, -bound, bound)
        params += [w, b]
    return tuple(params)


def reference_forward(x, params):
    w1, b1, w2, b2, w3, b3 = params
    h = jnp.maximum(x @ w1.T + b1, 0.0)
    h = jnp.maximum(h @ w2.T + b2, 0.0)
    return h @ w3.T + b3


if __name__ == "__main__":
    key = jax.random.PRNGKey(0)
    key, kx = jax.random.split(key)
    params = init_params(key)
    packed = pack_params(params)

    # Spec-sized input: matches torch.randn(3, 10).
    x = jax.random.normal(kx, (3, 10), jnp.float32)
    out = sequential_model_forward(x, packed)
    jax.block_until_ready(out)
    ref = reference_forward(x, params)
    assert out.shape == (3, 1)
    assert jnp.allclose(out, ref, atol=1e-5, rtol=1e-5)

    # Ragged, multi-tile batch: exercises the partial last block and 2-tile grid.
    x2 = jax.random.normal(jax.random.PRNGKey(1), (300, 10), jnp.float32)
    out2 = sequential_model_forward(x2, packed)
    jax.block_until_ready(out2)
    ref2 = reference_forward(x2, params)
    assert out2.shape == (300, 1)
    assert jnp.allclose(out2, ref2, atol=1e-4, rtol=1e-4)

    print("KERNEL_OK")
</pallas_src>

<mosaic_0001>
module attributes {stable_mosaic.version = 11 : i64} {
  func.func @mlp_kernel(%arg0: i32, %arg1: memref<10x128xf32, #tpu.memory_space<vmem>>, %arg2: memref<48x21xf32, #tpu.memory_space<vmem>>, %arg3: memref<1x128xf32, #tpu.memory_space<vmem>>) attributes {dimension_semantics = [#tpu.dimension_semantics<parallel>], iteration_bounds = array<i64: 1>, scalar_prefetch = 0 : i64, scratch_operands = 0 : i64, tpu.core_type = #tpu.core_type<tc>, window_params = [{transform_indices = @transform_0, window_bounds = array<i64: 10, 128>}, {pipeline_mode = #tpu.pipeline_mode<synchronous>, transform_indices = @transform_1, window_bounds = array<i64: 48, 21>}, {transform_indices = @transform_2, window_bounds = array<i64: 1, 128>}]} {
    %c0 = arith.constant 0 : index
    %c0_0 = arith.constant 0 : index
    %0 = vector.load %arg1[%c0, %c0_0] : memref<10x128xf32, #tpu.memory_space<vmem>>, vector<10x128xf32>
    %c0_1 = arith.constant 0 : index
    %c0_2 = arith.constant 0 : index
    %1 = vector.load %arg2[%c0_1, %c0_2] : memref<48x21xf32, #tpu.memory_space<vmem>>, vector<48x21xf32>
    %2 = vector.extract_strided_slice %1 {offsets = [0, 0], sizes = [20, 10], strides = [1, 1]} : vector<48x21xf32> to vector<20x10xf32>
    %3 = vector.extract_strided_slice %1 {offsets = [0, 10], sizes = [20, 1], strides = [1, 1]} : vector<48x21xf32> to vector<20x1xf32>
    %4 = vector.extract_strided_slice %1 {offsets = [24, 0], sizes = [10, 20], strides = [1, 1]} : vector<48x21xf32> to vector<10x20xf32>
    %5 = vector.extract_strided_slice %1 {offsets = [24, 20], sizes = [10, 1], strides = [1, 1]} : vector<48x21xf32> to vector<10x1xf32>
    %6 = vector.extract_strided_slice %1 {offsets = [40, 0], sizes = [1, 10], strides = [1, 1]} : vector<48x21xf32> to vector<1x10xf32>
    %7 = vector.extract_strided_slice %1 {offsets = [40, 10], sizes = [1, 1], strides = [1, 1]} : vector<48x21xf32> to vector<1x1xf32>
    %cst = arith.constant dense<0.000000e+00> : vector<20x128xf32>
    %8 = tpu.matmul %2, %0, %cst {dimension_numbers = #tpu.dot_dimension_numbers<[1], [0], [0], [1], [0, 0, 1, 1], [], []>} : vector<20x10xf32>, vector<10x128xf32>, vector<20x128xf32> -> vector<20x128xf32>
    %9 = vector.broadcast %3 : vector<20x1xf32> to vector<20x128xf32>
    %10 = arith.addf %8, %9 : vector<20x128xf32>
    %cst_3 = arith.constant 0.000000e+00 : f32
    %11 = vector.broadcast %cst_3 : f32 to vector<20x128xf32>
    %12 = arith.maximumf %10, %11 : vector<20x128xf32>
    %cst_4 = arith.constant dense<0.000000e+00> : vector<10x128xf32>
    %13 = tpu.matmul %4, %12, %cst_4 {dimension_numbers = #tpu.dot_dimension_numbers<[1], [0], [0], [1], [0, 0, 1, 1], [], []>} : vector<10x20xf32>, vector<20x128xf32>, vector<10x128xf32> -> vector<10x128xf32>
    %14 = vector.broadcast %5 : vector<10x1xf32> to vector<10x128xf32>
    %15 = arith.addf %13, %14 : vector<10x128xf32>
    %cst_5 = arith.constant 0.000000e+00 : f32
    %16 = vector.broadcast %cst_5 : f32 to vector<10x128xf32>
    %17 = arith.maximumf %15, %16 : vector<10x128xf32>
    %cst_6 = arith.constant dense<0.000000e+00> : vector<1x128xf32>
    %18 = tpu.matmul %6, %17, %cst_6 {dimension_numbers = #tpu.dot_dimension_numbers<[1], [0], [0], [1], [0, 0, 1, 1], [], []>} : vector<1x10xf32>, vector<10x128xf32>, vector<1x128xf32> -> vector<1x128xf32>
    %19 = vector.broadcast %7 : vector<1x1xf32> to vector<1x128xf32>
    %20 = arith.addf %18, %19 : vector<1x128xf32>
    %c0_7 = arith.constant 0 : index
    %c0_8 = arith.constant 0 : index
    %21 = vector.load %arg3[%c0_7, %c0_8] : memref<1x128xf32, #tpu.memory_space<vmem>>, vector<1x128xf32>
    tpu.vector_store %arg3[%c0_7, %c0_8], %20 {strides = array<i32>} : memref<1x128xf32, #tpu.memory_space<vmem>>, vector<1x128xf32>,
    return
  }
  func.func @transform_0(%arg0: i32) -> (i32, i32) {
    %c0_i32 = arith.constant 0 : i32
    %c0_i32_0 = arith.constant 0 : i32
    return %c0_i32, %arg0 : i32, i32
  }
  func.func @transform_1(%arg0: i32) -> (i32, i32) {
    %c0_i32 = arith.constant 0 : i32
    %c0_i32_0 = arith.constant 0 : i32
    %c0_i32_1 = arith.constant 0 : i32
    return %c0_i32, %c0_i32_0 : i32, i32
  }
  func.func @transform_2(%arg0: i32) -> (i32, i32) {
    %c0_i32 = arith.constant 0 : i32
    %c0_i32_0 = arith.constant 0 : i32
    return %c0_i32, %arg0 : i32, i32
  }
}

</mosaic_0001>

<llo_original>
// kernel: sequential_model_forward.1
$region0: #{sequential_model_forward.1}
  #allocation0 [shape = 'u32[]', space=smem, size = 0x4, offset = 0x4, fixed_abs, tag = 'smem constant byte address 0x4 - core index']
  #allocation1 [shape = 'u32[72,128]{1,0:T(1,128)}', space=vmem, size = 0x9000, scoped, tag = 'internal scratch']
  %s0 = inlined_call_operand.vmem [shape: f32[10,3], index: 0, kind: input, shape index: {}]
  %s1 = inlined_call_operand.vmem [shape: f32[48,21], index: 1, kind: input, shape index: {}]
  %s2 = inlined_call_operand.hbm [shape: f32[1,3], index: 2, kind: output, shape index: {}]
  %s3 = sld [smem:[#allocation0]]
  $region18: #{sequential_model_forward.1} parent=0
    _
  %s5 = ssub.s32 1, %s3
  %s6 = scalar_select 0, %s5, %s3
  $region1: #{sequential_model_forward.1} parent=0
    #allocation2 [shape = 'u8[512]{0}', space=vmem, size = 0x400, scoped, tag = 'output window, operand 0, single buffered']
    #allocation3 [shape = 's32[1]{0}', space=sflag, size = 0x4, scoped, tag = 'scoped memory for sequential_model_forward.1']
    %7 = vsyncpa [#allocation3], 0
    // Predicated region
    $region2: #{sequential_model_forward.1} parent=1 // pred_check
      _
    $region3: #{sequential_model_forward.1} parent=1 // pred_check_branch
      %9 = sbr.rel (0) target = $region5
    $region4: #{sequential_model_forward.1} parent=1 // pred_region
      _
    $region5: #{sequential_model_forward.1} parent=1 // pred_fallthru
      _
    // Predicated region
    $region6: #{sequential_model_forward.1} parent=1 // pred_check
      _
    $region7: #{sequential_model_forward.1} parent=1 // pred_check_branch
      %11 = sbr.rel (0) target = $region9
    $region8: #{sequential_model_forward.1} parent=1 // pred_region
      _
    $region9: #{sequential_model_forward.1} parent=1 // pred_fallthru
      _
    %v12 = vld [vmem:[%s0] sm:$0xff]
    %v13 = vld [vmem:[%s0 + $0x8] sm:$0x3]
    %v14 = vld [vmem:[%s1] sm:$0xff]
    %v15 = vld [vmem:[%s1 + $0x8] sm:$0xff]
    %v16 = vld [vmem:[%s1 + $0x10] sm:$0xff]
    %v17 = vld [vmem:[%s1 + $0x18] sm:$0xff]
    %v18 = vld [vmem:[%s1 + $0x20] sm:$0xff]
    %v19 = vld [vmem:[%s1 + $0x28] sm:$0xff]
    %21 = vset.pattern.permute.xlu0 10
    %22 = vperm.xlu0 %21, %v14
    %v23 = vpop.permute.xlu0 %22
    %26 = vset.pattern.permute.xlu0 10
    %27 = vperm.xlu0 %26, %v15
    %v28 = vpop.permute.xlu0 %27
    %31 = vset.pattern.permute.xlu0 10
    %32 = vperm.xlu0 %31, %v16
    %v33 = vpop.permute.xlu0 %32
    %vm35 = vcmask 80896
    %v36 = vsel %vm35, %v14, 0
    %v38 = vsel %vm35, %v15, 0
    %v40 = vsel %vm35, %v16, 0
    %vm42 = vcmask 1041408
    %v44 = vsel %vm42, %v13, 0
    %46 = vmatpush.msra.mxu0 0.0
    %47 = vmatpush.msra.mxu0 0.0
    %48 = vmatpush.msra.mxu0 0.0
    %49 = vmatpush.msra.mxu0 0.0
    %50 = vmatpush.msra.mxu0 0.0
    %51 = vmatpush.msra.mxu0 0.0
    %52 = vmatpush.msra.mxu0 0.0
    %53 = vmatpush.msra.mxu0 0.0
    %54 = vmatpush.msra.mxu0 0.0
    %55 = vmatpush.msra.mxu0 0.0
    %56 = vmatpush.msra.mxu0 0.0
    %57 = vmatpush.msra.mxu0 0.0
    %58 = vmatpush.msra.mxu0 0.0
    %59 = vmatpush.msra.mxu0 0.0
    %60 = vmatpush.msra.mxu0 %v44
    %61 = vmatpush.msra.mxu0 %v12
    %62 = vmatmul.f32.gmra.mxu0 %v36
    %v63 = vpop.f32.mrf.mxu0
    %v64 = vadd.f32 %v23, %v63
    %65 = vmatmul.f32.gmra.mxu0 %v38
    %v66 = vpop.f32.mrf.mxu0
    %v67 = vadd.f32 %v28, %v66
    %68 = vmatmul.f32.gmra.mxu0 %v40
    %v69 = vpop.f32.mrf.mxu0
    %v70 = vadd.f32 %v33, %v69
    %71 = vdwg.mxu0
    %v72 = vmax.f32 %v64, 0.0
    %v73 = vmax.f32 %v67, 0.0
    %v74 = vmax.f32 %v70, 0.0
    %76 = vset.pattern.permute.xlu0 20
    %77 = vperm.xlu0 %76, %v17
    %v78 = vpop.permute.xlu0 %77
    %81 = vset.pattern.permute.xlu0 20
    %82 = vperm.xlu0 %81, %v18
    %v83 = vpop.permute.xlu0 %82
    %vm85 = vcmask 162816
    %v86 = vsel %vm85, %v17, 0
    %v88 = vsel %vm85, %v18, 0
    %vm90 = vcmask 1043456
    %v92 = vsel %vm90, %v74, 0
    %94 = vmatpush.msra.mxu0 0.0
    %95 = vmatpush.msra.mxu0 0.0
    %96 = vmatpush.msra.mxu0 0.0
    %97 = vmatpush.msra.mxu0 0.0
    %98 = vmatpush.msra.mxu0 0.0
    %99 = vmatpush.msra.mxu0 0.0
    %100 = vmatpush.msra.mxu0 0.0
    %101 = vmatpush.msra.mxu0 0.0
    %102 = vmatpush.msra.mxu0 0.0
    %103 = vmatpush.msra.mxu0 0.0
    %104 = vmatpush.msra.mxu0 0.0
    %105 = vmatpush.msra.mxu0 0.0
    %106 = vmatpush.msra.mxu0 0.0
    %107 = vmatpush.msra.mxu0 %v92
    %108 = vmatpush.msra.mxu0 %v73
    %109 = vmatpush.msra.mxu0 %v72
    %110 = vmatmul.f32.gmra.mxu0 %v86
    %v111 = vpop.f32.mrf.mxu0
    %v112 = vadd.f32 %v78, %v111
    %113 = vmatmul.f32.gmra.mxu0 %v88
    %v114 = vpop.f32.mrf.mxu0
    %v115 = vadd.f32 %v83, %v114
    %116 = vdwg.mxu0
    %v117 = vmax.f32 %v112, 0.0
    %v118 = vmax.f32 %v115, 0.0
    %120 = vset.pattern.permute.xlu0 10
    %121 = vperm.xlu0 %120, %v19
    %v122 = vpop.permute.xlu0 %121
    %v124 = vsel %vm35, %v19, 0
    %v127 = vsel %vm42, %v118, 0
    %129 = vmatpush.msra.mxu0 0.0
    %130 = vmatpush.msra.mxu0 0.0
    %131 = vmatpush.msra.mxu0 0.0
    %132 = vmatpush.msra.mxu0 0.0
    %133 = vmatpush.msra.mxu0 0.0
    %134 = vmatpush.msra.mxu0 0.0
    %135 = vmatpush.msra.mxu0 0.0
    %136 = vmatpush.msra.mxu0 0.0
    %137 = vmatpush.msra.mxu0 0.0
    %138 = vmatpush.msra.mxu0 0.0
    %139 = vmatpush.msra.mxu0 0.0
    %140 = vmatpush.msra.mxu0 0.0
    %141 = vmatpush.msra.mxu0 0.0
    %142 = vmatpush.msra.mxu0 0.0
    %143 = vmatpush.msra.mxu0 %v127
    %144 = vmatpush.msra.mxu0 %v117
    %145 = vmatmul.f32.gmra.mxu0 %v124
    %v146 = vpop.f32.mrf.mxu0
    %v147 = vadd.f32 %v122, %v146
    %148 = vdwg.mxu0
    %149 = vst [vmem:[#allocation2] sm:$0x1] %v147
    // Predicated region
    $region10: #{sequential_model_forward.1} parent=1 // pred_check
      _
    $region11: #{sequential_model_forward.1} parent=1 // pred_check_branch
      %151 = sbr.rel (0) target = $region13
    $region12: #{sequential_model_forward.1} parent=1 // pred_region
      %153 = vsyncadd [#allocation3], 0
      %s155 = sshll.u32 [#allocation2], 4
      %s156 = int_to_ptr.vmem [resolvable:$true] %s155
      %s157 = sshll.u32 %s2, 4
      %s158 = int_to_ptr.hbm [resolvable:$true] %s157
      %160 = dma.vmem_to_hbm [thread:$0]  %s156, 16, %s158, [#allocation3]
    $region13: #{sequential_model_forward.1} parent=1 // pred_fallthru
      _
    // Predicated region
    $region14: #{sequential_model_forward.1} parent=1 // pred_check
      _
    $region15: #{sequential_model_forward.1} parent=1 // pred_check_branch
      %162 = sbr.rel (0) target = $region17
    $region16: #{sequential_model_forward.1} parent=1 // pred_region
      %164 = dma.done [#allocation3], 16
    $region17: #{sequential_model_forward.1} parent=1 // pred_fallthru
      _
    %165 = vsyncpa [#allocation3], 1

</llo_original>
